<compile_context>
chip_gen: v6e
topology: v6e:2x2x1
jax: 0.10.0
libtpu: 0.0.40
codegen_flags: <defaults>
</compile_context>

<pallas_src>
import jax
import jax.numpy as jnp
from jax.experimental import pallas as pl
from jax.experimental.pallas import tpu as pltpu


def _round_up(n: int, m: int) -> int:
    return ((n + m - 1) // m) * m


def dqn_kernel(x_ref, w1_ref, b1_ref, w2_ref, b2_ref,
               w3_ref, b3_ref, w4_ref, b4_ref, o_ref):
    # x arrives as f32 (no wrapper-side cast); cast to the weight compute dtype here.
    x = x_ref[...].astype(w1_ref.dtype)
    # fc1 + relu (bf16 MXU, f32 accumulate, f32 bias/relu on VPU)
    h = jnp.dot(x, w1_ref[...], preferred_element_type=jnp.float32)
    h = jnp.maximum(h + b1_ref[...], 0.0).astype(w2_ref.dtype)
    # fc2 + relu
    h = jnp.dot(h, w2_ref[...], preferred_element_type=jnp.float32)
    h = jnp.maximum(h + b2_ref[...], 0.0).astype(w3_ref.dtype)
    # fc3 + relu (natural 64-wide hidden; no lane padding needed for correctness)
    h = jnp.dot(h, w3_ref[...], preferred_element_type=jnp.float32)
    h = jnp.maximum(h + b3_ref[...], 0.0).astype(w4_ref.dtype)
    # fc4 (no activation) — narrow-N matmul, output stored at its natural width
    out = jnp.dot(h, w4_ref[...], preferred_element_type=jnp.float32)
    o_ref[...] = (out + b4_ref[...]).astype(o_ref.dtype)


def pack_params(params, compute_dtype=jnp.bfloat16):
    """Cast weights to the MXU compute dtype; keep biases f32. No shape padding."""
    packed = {}
    for k, v in params.items():
        packed[k] = v.astype(compute_dtype) if k.startswith("w") else v.astype(jnp.float32)
    return packed


def dqn_forward(x, params, *, tb=2048, compute_dtype=jnp.bfloat16):
    """x: (B, input_dim) f32; params: dict of (in,out) weights and (1,out) biases."""
    B, in_dim = x.shape
    packed = pack_params(params, compute_dtype)
    H = packed["w1"].shape[1]
    H2 = packed["w3"].shape[1]
    OUT = packed["w4"].shape[1]

    # Batch tile: multiple of 8 (f32 sublane); don't over-pad tiny batches.
    tb = min(tb, _round_up(B, 8))
    # Keep >= 2 grid steps for reasonably sized batches so v7x's 2 TCs both get work.
    if B >= 1024:
        tb = min(tb, _round_up(-(-B // 2), 8))
    grid = (pl.cdiv(B, tb),)   # partial final tile handled by Pallas (OOB writes dropped)

    def const_spec(arr):
        return pl.BlockSpec(arr.shape, lambda i: (0, 0))  # weights resident in VMEM

    in_specs = [
        pl.BlockSpec((tb, in_dim), lambda i: (i, 0)),      # x: streamed per batch tile, f32
        const_spec(packed["w1"]), const_spec(packed["b1"]),
        const_spec(packed["w2"]), const_spec(packed["b2"]),
        const_spec(packed["w3"]), const_spec(packed["b3"]),
        const_spec(packed["w4"]), const_spec(packed["b4"]),
    ]
    out_spec = pl.BlockSpec((tb, OUT), lambda i: (i, 0))    # narrow, unpadded output

    flops = 2 * B * (in_dim * H + H * H + H * H2 + H2 * OUT)
    weight_bytes = sum(int(v.size) * v.dtype.itemsize for v in packed.values())
    bytes_accessed = int(x.size) * x.dtype.itemsize + weight_bytes + B * OUT * 4

    out = pl.pallas_call(
        dqn_kernel,
        out_shape=jax.ShapeDtypeStruct((B, OUT), jnp.float32),
        grid=grid,
        in_specs=in_specs,
        out_specs=out_spec,
        compiler_params=pltpu.CompilerParams(
            dimension_semantics=("parallel",),              # batch tiles across TCs (v7x)
            vmem_limit_bytes=32 * 1024 * 1024,              # covers v5e's 16 MiB default
        ),
        cost_estimate=pl.CostEstimate(
            flops=flops, transcendentals=0, bytes_accessed=bytes_accessed),
    )(x, packed["w1"], packed["b1"], packed["w2"], packed["b2"],
      packed["w3"], packed["b3"], packed["w4"], packed["b4"])

    return out


def xavier_uniform(key, fan_in, fan_out, dtype=jnp.float32):
    # Matches torch.nn.init.xavier_uniform_ (gain=1.0)
    limit = (6.0 / (fan_in + fan_out)) ** 0.5
    return jax.random.uniform(key, (fan_in, fan_out), dtype, -limit, limit)


def init_dqn_params(key, input_dim, output_dim, hidden_size=128):
    k1, k2, k3, k4 = jax.random.split(key, 4)
    h2 = hidden_size // 2
    return {
        "w1": xavier_uniform(k1, input_dim, hidden_size),
        "b1": jnp.full((1, hidden_size), 0.01, jnp.float32),
        "w2": xavier_uniform(k2, hidden_size, hidden_size),
        "b2": jnp.full((1, hidden_size), 0.01, jnp.float32),
        "w3": xavier_uniform(k3, hidden_size, h2),
        "b3": jnp.full((1, h2), 0.01, jnp.float32),
        "w4": xavier_uniform(k4, h2, output_dim),
        "b4": jnp.full((1, output_dim), 0.01, jnp.float32),
    }


def dqn_reference(x, params, compute_dtype=jnp.bfloat16):
    """Pure-JAX reference matching the kernel's bf16-operand / f32-accumulate path."""
    def lin(h, w, b, relu):
        h = jnp.dot(h.astype(compute_dtype), w.astype(compute_dtype),
                    preferred_element_type=jnp.float32)
        h = h + b.astype(jnp.float32)
        return jnp.maximum(h, 0.0) if relu else h

    h = lin(x, params["w1"], params["b1"], True)
    h = lin(h, params["w2"], params["b2"], True)
    h = lin(h, params["w3"], params["b3"], True)
    return lin(h, params["w4"], params["b4"], False)


if __name__ == "__main__":
    key = jax.random.PRNGKey(0)
    k_params, k_x = jax.random.split(key)

    input_dim = 32     # flattened maze-state features
    output_dim = 4     # number of actions
    hidden_size = 128
    batch = 8          # small online-inference batch for the demo

    params = init_dqn_params(k_params, input_dim, output_dim, hidden_size)
    x = jax.random.normal(k_x, (batch, input_dim), jnp.float32)

    q_values = dqn_forward(x, params)
    jax.block_until_ready(q_values)

    ref = dqn_reference(x, params)
    assert q_values.shape == (batch, output_dim)
    assert jnp.allclose(q_values, ref, atol=2e-2, rtol=2e-2), "mismatch vs reference"

    print("KERNEL_OK")
</pallas_src>

<mosaic_0001>
module attributes {stable_mosaic.version = 11 : i64} {
  func.func @dqn_kernel(%arg0: i32, %arg1: memref<8x32xf32, #tpu.memory_space<vmem>>, %arg2: memref<32x128xbf16, #tpu.memory_space<vmem>>, %arg3: memref<1x128xf32, #tpu.memory_space<vmem>>, %arg4: memref<128x128xbf16, #tpu.memory_space<vmem>>, %arg5: memref<1x128xf32, #tpu.memory_space<vmem>>, %arg6: memref<128x64xbf16, #tpu.memory_space<vmem>>, %arg7: memref<1x64xf32, #tpu.memory_space<vmem>>, %arg8: memref<64x4xbf16, #tpu.memory_space<vmem>>, %arg9: memref<1x4xf32, #tpu.memory_space<vmem>>, %arg10: memref<8x4xf32, #tpu.memory_space<vmem>>) attributes {dimension_semantics = [#tpu.dimension_semantics<parallel>], iteration_bounds = array<i64: 1>, scalar_prefetch = 0 : i64, scratch_operands = 0 : i64, tpu.core_type = #tpu.core_type<tc>, window_params = [{transform_indices = @transform_0, window_bounds = array<i64: 8, 32>}, {pipeline_mode = #tpu.pipeline_mode<synchronous>, transform_indices = @transform_1, window_bounds = array<i64: 32, 128>}, {pipeline_mode = #tpu.pipeline_mode<synchronous>, transform_indices = @transform_2, window_bounds = array<i64: 1, 128>}, {pipeline_mode = #tpu.pipeline_mode<synchronous>, transform_indices = @transform_3, window_bounds = array<i64: 128, 128>}, {pipeline_mode = #tpu.pipeline_mode<synchronous>, transform_indices = @transform_4, window_bounds = array<i64: 1, 128>}, {pipeline_mode = #tpu.pipeline_mode<synchronous>, transform_indices = @transform_5, window_bounds = array<i64: 128, 64>}, {pipeline_mode = #tpu.pipeline_mode<synchronous>, transform_indices = @transform_6, window_bounds = array<i64: 1, 64>}, {pipeline_mode = #tpu.pipeline_mode<synchronous>, transform_indices = @transform_7, window_bounds = array<i64: 64, 4>}, {pipeline_mode = #tpu.pipeline_mode<synchronous>, transform_indices = @transform_8, window_bounds = array<i64: 1, 4>}, {transform_indices = @transform_9, window_bounds = array<i64: 8, 4>}]} {
    %c0 = arith.constant 0 : index
    %c0_0 = arith.constant 0 : index
    %0 = vector.load %arg1[%c0, %c0_0] : memref<8x32xf32, #tpu.memory_space<vmem>>, vector<8x32xf32>
    %1 = arith.truncf %0 : vector<8x32xf32> to vector<8x32xbf16>
    %c0_1 = arith.constant 0 : index
    %c0_2 = arith.constant 0 : index
    %2 = vector.load %arg2[%c0_1, %c0_2] : memref<32x128xbf16, #tpu.memory_space<vmem>>, vector<32x128xbf16>
    %cst = arith.constant dense<0.000000e+00> : vector<8x128xf32>
    %3 = tpu.matmul %1, %2, %cst {dimension_numbers = #tpu.dot_dimension_numbers<[1], [0], [0], [1], [0, 0, 1, 1], [], []>} : vector<8x32xbf16>, vector<32x128xbf16>, vector<8x128xf32> -> vector<8x128xf32>
    %c0_3 = arith.constant 0 : index
    %c0_4 = arith.constant 0 : index
    %4 = vector.load %arg3[%c0_3, %c0_4] : memref<1x128xf32, #tpu.memory_space<vmem>>, vector<1x128xf32>
    %5 = vector.broadcast %4 : vector<1x128xf32> to vector<8x128xf32>
    %6 = arith.addf %3, %5 : vector<8x128xf32>
    %cst_5 = arith.constant 0.000000e+00 : f32
    %7 = vector.broadcast %cst_5 : f32 to vector<8x128xf32>
    %8 = arith.maximumf %6, %7 : vector<8x128xf32>
    %9 = arith.truncf %8 : vector<8x128xf32> to vector<8x128xbf16>
    %c0_6 = arith.constant 0 : index
    %c0_7 = arith.constant 0 : index
    %10 = vector.load %arg4[%c0_6, %c0_7] : memref<128x128xbf16, #tpu.memory_space<vmem>>, vector<128x128xbf16>
    %cst_8 = arith.constant dense<0.000000e+00> : vector<8x128xf32>
    %11 = tpu.matmul %9, %10, %cst_8 {dimension_numbers = #tpu.dot_dimension_numbers<[1], [0], [0], [1], [0, 0, 1, 1], [], []>} : vector<8x128xbf16>, vector<128x128xbf16>, vector<8x128xf32> -> vector<8x128xf32>
    %c0_9 = arith.constant 0 : index
    %c0_10 = arith.constant 0 : index
    %12 = vector.load %arg5[%c0_9, %c0_10] : memref<1x128xf32, #tpu.memory_space<vmem>>, vector<1x128xf32>
    %13 = vector.broadcast %12 : vector<1x128xf32> to vector<8x128xf32>
    %14 = arith.addf %11, %13 : vector<8x128xf32>
    %cst_11 = arith.constant 0.000000e+00 : f32
    %15 = vector.broadcast %cst_11 : f32 to vector<8x128xf32>
    %16 = arith.maximumf %14, %15 : vector<8x128xf32>
    %17 = arith.truncf %16 : vector<8x128xf32> to vector<8x128xbf16>
    %c0_12 = arith.constant 0 : index
    %c0_13 = arith.constant 0 : index
    %18 = vector.load %arg6[%c0_12, %c0_13] : memref<128x64xbf16, #tpu.memory_space<vmem>>, vector<128x64xbf16>
    %cst_14 = arith.constant dense<0.000000e+00> : vector<8x64xf32>
    %19 = tpu.matmul %17, %18, %cst_14 {dimension_numbers = #tpu.dot_dimension_numbers<[1], [0], [0], [1], [0, 0, 1, 1], [], []>} : vector<8x128xbf16>, vector<128x64xbf16>, vector<8x64xf32> -> vector<8x64xf32>
    %c0_15 = arith.constant 0 : index
    %c0_16 = arith.constant 0 : index
    %20 = vector.load %arg7[%c0_15, %c0_16] : memref<1x64xf32, #tpu.memory_space<vmem>>, vector<1x64xf32>
    %21 = vector.broadcast %20 : vector<1x64xf32> to vector<8x64xf32>
    %22 = arith.addf %19, %21 : vector<8x64xf32>
    %cst_17 = arith.constant 0.000000e+00 : f32
    %23 = vector.broadcast %cst_17 : f32 to vector<8x64xf32>
    %24 = arith.maximumf %22, %23 : vector<8x64xf32>
    %25 = arith.truncf %24 : vector<8x64xf32> to vector<8x64xbf16>
    %c0_18 = arith.constant 0 : index
    %c0_19 = arith.constant 0 : index
    %26 = vector.load %arg8[%c0_18, %c0_19] : memref<64x4xbf16, #tpu.memory_space<vmem>>, vector<64x4xbf16>
    %cst_20 = arith.constant dense<0.000000e+00> : vector<8x4xf32>
    %27 = tpu.matmul %25, %26, %cst_20 {dimension_numbers = #tpu.dot_dimension_numbers<[1], [0], [0], [1], [0, 0, 1, 1], [], []>} : vector<8x64xbf16>, vector<64x4xbf16>, vector<8x4xf32> -> vector<8x4xf32>
    %c0_21 = arith.constant 0 : index
    %c0_22 = arith.constant 0 : index
    %28 = vector.load %arg9[%c0_21, %c0_22] : memref<1x4xf32, #tpu.memory_space<vmem>>, vector<1x4xf32>
    %29 = vector.broadcast %28 : vector<1x4xf32> to vector<8x4xf32>
    %30 = arith.addf %27, %29 : vector<8x4xf32>
    %c0_23 = arith.constant 0 : index
    %c0_24 = arith.constant 0 : index
    %31 = vector.load %arg10[%c0_23, %c0_24] : memref<8x4xf32, #tpu.memory_space<vmem>>, vector<8x4xf32>
    tpu.vector_store %arg10[%c0_23, %c0_24], %30 {strides = array<i32>} : memref<8x4xf32, #tpu.memory_space<vmem>>, vector<8x4xf32>,
    return
  }
  func.func @transform_0(%arg0: i32) -> (i32, i32) {
    %c0_i32 = arith.constant 0 : i32
    %c0_i32_0 = arith.constant 0 : i32
    return %arg0, %c0_i32 : i32, i32
  }
  func.func @transform_1(%arg0: i32) -> (i32, i32) {
    %c0_i32 = arith.constant 0 : i32
    %c0_i32_0 = arith.constant 0 : i32
    %c0_i32_1 = arith.constant 0 : i32
    return %c0_i32, %c0_i32_0 : i32, i32
  }
  func.func @transform_2(%arg0: i32) -> (i32, i32) {
    %c0_i32 = arith.constant 0 : i32
    %c0_i32_0 = arith.constant 0 : i32
    %c0_i32_1 = arith.constant 0 : i32
    return %c0_i32, %c0_i32_0 : i32, i32
  }
  func.func @transform_3(%arg0: i32) -> (i32, i32) {
    %c0_i32 = arith.constant 0 : i32
    %c0_i32_0 = arith.constant 0 : i32
    %c0_i32_1 = arith.constant 0 : i32
    return %c0_i32, %c0_i32_0 : i32, i32
  }
  func.func @transform_4(%arg0: i32) -> (i32, i32) {
    %c0_i32 = arith.constant 0 : i32
    %c0_i32_0 = arith.constant 0 : i32
    %c0_i32_1 = arith.constant 0 : i32
    return %c0_i32, %c0_i32_0 : i32, i32
  }
  func.func @transform_5(%arg0: i32) -> (i32, i32) {
    %c0_i32 = arith.constant 0 : i32
    %c0_i32_0 = arith.constant 0 : i32
    %c0_i32_1 = arith.constant 0 : i32
    return %c0_i32, %c0_i32_0 : i32, i32
  }
  func.func @transform_6(%arg0: i32) -> (i32, i32) {
    %c0_i32 = arith.constant 0 : i32
    %c0_i32_0 = arith.constant 0 : i32
    %c0_i32_1 = arith.constant 0 : i32
    return %c0_i32, %c0_i32_0 : i32, i32
  }
  func.func @transform_7(%arg0: i32) -> (i32, i32) {
    %c0_i32 = arith.constant 0 : i32
    %c0_i32_0 = arith.constant 0 : i32
    %c0_i32_1 = arith.constant 0 : i32
    return %c0_i32, %c0_i32_0 : i32, i32
  }
  func.func @transform_8(%arg0: i32) -> (i32, i32) {
    %c0_i32 = arith.constant 0 : i32
    %c0_i32_0 = arith.constant 0 : i32
    %c0_i32_1 = arith.constant 0 : i32
    return %c0_i32, %c0_i32_0 : i32, i32
  }
  func.func @transform_9(%arg0: i32) -> (i32, i32) {
    %c0_i32 = arith.constant 0 : i32
    %c0_i32_0 = arith.constant 0 : i32
    return %arg0, %c0_i32 : i32, i32
  }
}

</mosaic_0001>

<llo_original>
// kernel: tpu_custom_call.1
$region0: #{tpu_custom_call.1}
  #allocation0 [shape = 'u32[]', space=smem, size = 0x4, offset = 0x4, fixed_abs, tag = 'smem constant byte address 0x4 - core index']
  #allocation1 [shape = 'u32[144,128]{1,0:T(1,128)}', space=vmem, size = 0x12000, scoped, tag = 'internal scratch']
  %s0 = inlined_call_operand.vmem [shape: f32[8,32], index: 0, kind: input, shape index: {}]
  %s1 = inlined_call_operand.vmem [shape: bf16[32,128], index: 1, kind: input, shape index: {}]
  %s2 = inlined_call_operand.vmem [shape: f32[1,128], index: 2, kind: input, shape index: {}]
  %s3 = inlined_call_operand.vmem [shape: bf16[128,128], index: 3, kind: input, shape index: {}]
  %s4 = inlined_call_operand.vmem [shape: f32[1,128], index: 4, kind: input, shape index: {}]
  %s5 = inlined_call_operand.vmem [shape: bf16[128,64], index: 5, kind: input, shape index: {}]
  %s6 = inlined_call_operand.vmem [shape: f32[1,64], index: 6, kind: input, shape index: {}]
  %s7 = inlined_call_operand.vmem [shape: bf16[64,4], index: 7, kind: input, shape index: {}]
  %s8 = inlined_call_operand.vmem [shape: f32[1,4], index: 8, kind: input, shape index: {}]
  %s9 = inlined_call_operand.vmem [shape: f32[8,4], index: 9, kind: output, shape index: {}]
  %s10 = sld [smem:[#allocation0]]
  $region46: #{tpu_custom_call.1} parent=0
    _
  %s12 = ssub.s32 1, %s10
  %s13 = scalar_select 0, %s12, %s10
  // Predicated region
  $region2: #{tpu_custom_call.1} parent=0 // pred_check
    _
  $region3: #{tpu_custom_call.1} parent=0 // pred_check_branch
    %15 = sbr.rel (0) target = $region5
  $region4: #{tpu_custom_call.1} parent=0 // pred_region
    _
  $region5: #{tpu_custom_call.1} parent=0 // pred_fallthru
    _
  // Predicated region
  $region6: #{tpu_custom_call.1} parent=0 // pred_check
    _
  $region7: #{tpu_custom_call.1} parent=0 // pred_check_branch
    %17 = sbr.rel (0) target = $region9
  $region8: #{tpu_custom_call.1} parent=0 // pred_region
    _
  $region9: #{tpu_custom_call.1} parent=0 // pred_fallthru
    _
  // Predicated region
  $region10: #{tpu_custom_call.1} parent=0 // pred_check
    _
  $region11: #{tpu_custom_call.1} parent=0 // pred_check_branch
    %19 = sbr.rel (0) target = $region13
  $region12: #{tpu_custom_call.1} parent=0 // pred_region
    _
  $region13: #{tpu_custom_call.1} parent=0 // pred_fallthru
    _
  // Predicated region
  $region14: #{tpu_custom_call.1} parent=0 // pred_check
    _
  $region15: #{tpu_custom_call.1} parent=0 // pred_check_branch
    %21 = sbr.rel (0) target = $region17
  $region16: #{tpu_custom_call.1} parent=0 // pred_region
    _
  $region17: #{tpu_custom_call.1} parent=0 // pred_fallthru
    _
  // Predicated region
  $region18: #{tpu_custom_call.1} parent=0 // pred_check
    _
  $region19: #{tpu_custom_call.1} parent=0 // pred_check_branch
    %23 = sbr.rel (0) target = $region21
  $region20: #{tpu_custom_call.1} parent=0 // pred_region
    _
  $region21: #{tpu_custom_call.1} parent=0 // pred_fallthru
    _
  // Predicated region
  $region22: #{tpu_custom_call.1} parent=0 // pred_check
    _
  $region23: #{tpu_custom_call.1} parent=0 // pred_check_branch
    %25 = sbr.rel (0) target = $region25
  $region24: #{tpu_custom_call.1} parent=0 // pred_region
    _
  $region25: #{tpu_custom_call.1} parent=0 // pred_fallthru
    _
  // Predicated region
  $region26: #{tpu_custom_call.1} parent=0 // pred_check
    _
  $region27: #{tpu_custom_call.1} parent=0 // pred_check_branch
    %27 = sbr.rel (0) target = $region29
  $region28: #{tpu_custom_call.1} parent=0 // pred_region
    _
  $region29: #{tpu_custom_call.1} parent=0 // pred_fallthru
    _
  // Predicated region
  $region30: #{tpu_custom_call.1} parent=0 // pred_check
    _
  $region31: #{tpu_custom_call.1} parent=0 // pred_check_branch
    %29 = sbr.rel (0) target = $region33
  $region32: #{tpu_custom_call.1} parent=0 // pred_region
    _
  $region33: #{tpu_custom_call.1} parent=0 // pred_fallthru
    _
  // Predicated region
  $region34: #{tpu_custom_call.1} parent=0 // pred_check
    _
  $region35: #{tpu_custom_call.1} parent=0 // pred_check_branch
    %31 = sbr.rel (0) target = $region37
  $region36: #{tpu_custom_call.1} parent=0 // pred_region
    _
  $region37: #{tpu_custom_call.1} parent=0 // pred_fallthru
    _
  %v33 = vld [vmem:[%s0] sm:$0xff]
  %v34 = vpack.c.bf16 %v33, %v33
  %v35 = vld [vmem:[%s1] sm:$0xf]
  %v36 = vld [vmem:[%s1 + $0x4] sm:$0xf]
  %v37 = vld [vmem:[%s1 + $0x8] sm:$0xf]
  %v38 = vld [vmem:[%s1 + $0xc] sm:$0xf]
  %v39 = vld [vmem:[%s2] sm:$0x1]
  %v41 = vlaneseq
  %v42 = vshrl.u32 %v41, 7
  %v43 = vsub.s32 0, %v42
  %v44 = vrot.slane %v39, %v43
  %v50 = vunpack.c.l.b16 %v35
  %v51 = vunpack.c.l.b16 %v36
  %v52 = vunpack.c.l.b16 %v37
  %v53 = vunpack.c.l.b16 %v38
  %v54 = vpack.c.b16 %v51, %v50
  %v55 = vpack.c.b16 %v53, %v52
  %vm58 = vcmask 261120
  %v60 = vsel %vm58, %v34, 0
  %62 = vmatprep.subr.bf16.mxu0 0
  %63 = vmatpush1.bf16.msra.mxu0 0
  %64 = vmatprep.subr.bf16.mxu0 0
  %65 = vmatpush1.bf16.msra.mxu0 0
  %66 = vmatprep.subr.bf16.mxu0 0
  %67 = vmatpush1.bf16.msra.mxu0 0
  %68 = vmatprep.subr.bf16.mxu0 0
  %69 = vmatpush1.bf16.msra.mxu0 0
  %70 = vmatprep.subr.bf16.mxu0 0
  %71 = vmatpush1.bf16.msra.mxu0 0
  %72 = vmatprep.subr.bf16.mxu0 0
  %73 = vmatpush1.bf16.msra.mxu0 0
  %74 = vmatprep.subr.bf16.mxu0 0
  %75 = vmatpush1.bf16.msra.mxu0 %v55
  %76 = vmatprep.subr.bf16.mxu0 0
  %77 = vmatpush1.bf16.msra.mxu0 %v54
  %78 = vmatprep.subr.bf16.mxu0 0
  %79 = vmatpush2.bf16.msra.mxu0 0
  %80 = vmatprep.subr.bf16.mxu0 0
  %81 = vmatpush2.bf16.msra.mxu0 0
  %82 = vmatprep.subr.bf16.mxu0 0
  %83 = vmatpush2.bf16.msra.mxu0 0
  %84 = vmatprep.subr.bf16.mxu0 0
  %85 = vmatpush2.bf16.msra.mxu0 0
  %86 = vmatprep.subr.bf16.mxu0 0
  %87 = vmatpush2.bf16.msra.mxu0 0
  %88 = vmatprep.subr.bf16.mxu0 0
  %89 = vmatpush2.bf16.msra.mxu0 0
  %90 = vmatprep.subr.bf16.mxu0 0
  %91 = vmatpush2.bf16.msra.mxu0 0
  %92 = vmatprep.subr.bf16.mxu0 0
  %93 = vmatpush2.bf16.msra.mxu0 0
  %94 = vmatprep.mubr.bf16.mxu0 0
  %95 = vmatmul.mubr.bf16.gmra.mxu0 %v60
  %v96 = vpop.f32.mrf.mxu0
  %v97 = vadd.f32 %v44, %v96
  %v98 = vpop.f32.mrf.mxu0
  %v99 = vpop.f32.mrf.mxu0
  %v100 = vpop.f32.mrf.mxu0
  %101 = vdwg.mxu0
  %v102 = vmax.f32 %v97, 0.0
  %v103 = vpack.c.bf16 %v102, %v102
  %v104 = vld [vmem:[%s3] sm:$0xf]
  %v105 = vld [vmem:[%s3 + $0x4] sm:$0xf]
  %v106 = vld [vmem:[%s3 + $0x8] sm:$0xf]
  %v107 = vld [vmem:[%s3 + $0xc] sm:$0xf]
  %v108 = vld [vmem:[%s3 + $0x10] sm:$0xf]
  %v109 = vld [vmem:[%s3 + $0x14] sm:$0xf]
  %v110 = vld [vmem:[%s3 + $0x18] sm:$0xf]
  %v111 = vld [vmem:[%s3 + $0x1c] sm:$0xf]
  %v112 = vld [vmem:[%s3 + $0x20] sm:$0xf]
  %v113 = vld [vmem:[%s3 + $0x24] sm:$0xf]
  %v114 = vld [vmem:[%s3 + $0x28] sm:$0xf]
  %v115 = vld [vmem:[%s3 + $0x2c] sm:$0xf]
  %v116 = vld [vmem:[%s3 + $0x30] sm:$0xf]
  %v117 = vld [vmem:[%s3 + $0x34] sm:$0xf]
  %v118 = vld [vmem:[%s3 + $0x38] sm:$0xf]
  %v119 = vld [vmem:[%s3 + $0x3c] sm:$0xf]
  %v120 = vld [vmem:[%s4] sm:$0x1]
  %v122 = vlaneseq
  %v123 = vshrl.u32 %v122, 7
  %v124 = vsub.s32 0, %v123
  %v125 = vrot.slane %v120, %v124
  %v143 = vunpack.c.l.b16 %v104
  %v144 = vunpack.c.l.b16 %v105
  %v145 = vunpack.c.l.b16 %v106
  %v146 = vunpack.c.l.b16 %v107
  %v147 = vunpack.c.l.b16 %v108
  %v148 = vunpack.c.l.b16 %v109
  %v149 = vunpack.c.l.b16 %v110
  %v150 = vunpack.c.l.b16 %v111
  %v151 = vunpack.c.l.b16 %v112
  %v152 = vunpack.c.l.b16 %v113
  %v153 = vunpack.c.l.b16 %v114
  %v154 = vunpack.c.l.b16 %v115
  %v155 = vunpack.c.l.b16 %v116
  %v156 = vunpack.c.l.b16 %v117
  %v157 = vunpack.c.l.b16 %v118
  %v158 = vunpack.c.l.b16 %v119
  %v159 = vpack.c.b16 %v144, %v143
  %v160 = vpack.c.b16 %v146, %v145
  %v161 = vpack.c.b16 %v148, %v147
  %v162 = vpack.c.b16 %v150, %v149
  %v163 = vpack.c.b16 %v152, %v151
  %v164 = vpack.c.b16 %v154, %v153
  %v165 = vpack.c.b16 %v156, %v155
  %v166 = vpack.c.b16 %v158, %v157
  %175 = vmatprep.subr.bf16.mxu0 0
  %176 = vmatpush1.bf16.msra.mxu0 %v166
  %177 = vmatprep.subr.bf16.mxu0 0
  %178 = vmatpush1.bf16.msra.mxu0 %v165
  %179 = vmatprep.subr.bf16.mxu0 0
  %180 = vmatpush1.bf16.msra.mxu0 %v164
  %181 = vmatprep.subr.bf16.mxu0 0
  %182 = vmatpush1.bf16.msra.mxu0 %v163
  %183 = vmatprep.subr.bf16.mxu0 0
  %184 = vmatpush1.bf16.msra.mxu0 %v162
  %185 = vmatprep.subr.bf16.mxu0 0
  %186 = vmatpush1.bf16.msra.mxu0 %v161
  %187 = vmatprep.subr.bf16.mxu0 0
  %188 = vmatpush1.bf16.msra.mxu0 %v160
  %189 = vmatprep.subr.bf16.mxu0 0
  %190 = vmatpush1.bf16.msra.mxu0 %v159
  %191 = vmatprep.subr.bf16.mxu0 0
  %192 = vmatpush2.bf16.msra.mxu0 0
  %193 = vmatprep.subr.bf16.mxu0 0
  %194 = vmatpush2.bf16.msra.mxu0 0
  %195 = vmatprep.subr.bf16.mxu0 0
  %196 = vmatpush2.bf16.msra.mxu0 0
  %197 = vmatprep.subr.bf16.mxu0 0
  %198 = vmatpush2.bf16.msra.mxu0 0
  %199 = vmatprep.subr.bf16.mxu0 0
  %200 = vmatpush2.bf16.msra.mxu0 0
  %201 = vmatprep.subr.bf16.mxu0 0
  %202 = vmatpush2.bf16.msra.mxu0 0
  %203 = vmatprep.subr.bf16.mxu0 0
  %204 = vmatpush2.bf16.msra.mxu0 0
  %205 = vmatprep.subr.bf16.mxu0 0
  %206 = vmatpush2.bf16.msra.mxu0 0
  %207 = vmatprep.mubr.bf16.mxu0 0
  %208 = vmatmul.mubr.bf16.gmra.mxu0 %v103
  %v209 = vpop.f32.mrf.mxu0
  %v210 = vadd.f32 %v125, %v209
  %v211 = vpop.f32.mrf.mxu0
  %v212 = vpop.f32.mrf.mxu0
  %v213 = vpop.f32.mrf.mxu0
  %214 = vdwg.mxu0
  %v215 = vmax.f32 %v210, 0.0
  %v216 = vpack.c.bf16 %v215, %v215
  %v217 = vld [vmem:[%s5] sm:$0xf]
  %v218 = vld [vmem:[%s5 + $0x4] sm:$0xf]
  %v219 = vld [vmem:[%s5 + $0x8] sm:$0xf]
  %v220 = vld [vmem:[%s5 + $0xc] sm:$0xf]
  %v221 = vld [vmem:[%s5 + $0x10] sm:$0xf]
  %v222 = vld [vmem:[%s5 + $0x14] sm:$0xf]
  %v223 = vld [vmem:[%s5 + $0x18] sm:$0xf]
  %v224 = vld [vmem:[%s5 + $0x1c] sm:$0xf]
  %v225 = vld [vmem:[%s5 + $0x20] sm:$0xf]
  %v226 = vld [vmem:[%s5 + $0x24] sm:$0xf]
  %v227 = vld [vmem:[%s5 + $0x28] sm:$0xf]
  %v228 = vld [vmem:[%s5 + $0x2c] sm:$0xf]
  %v229 = vld [vmem:[%s5 + $0x30] sm:$0xf]
  %v230 = vld [vmem:[%s5 + $0x34] sm:$0xf]
  %v231 = vld [vmem:[%s5 + $0x38] sm:$0xf]
  %v232 = vld [vmem:[%s5 + $0x3c] sm:$0xf]
  %v233 = vld [vmem:[%s6] sm:$0x1]
  %v235 = vlaneseq
  %v236 = vshrl.u32 %v235, 7
  %v237 = vsub.s32 0, %v236
  %v238 = vrot.slane %v233, %v237
  %v256 = vunpack.c.l.b16 %v217
  %v257 = vunpack.c.l.b16 %v218
  %v258 = vunpack.c.l.b16 %v219
  %v259 = vunpack.c.l.b16 %v220
  %v260 = vunpack.c.l.b16 %v221
  %v261 = vunpack.c.l.b16 %v222
  %v262 = vunpack.c.l.b16 %v223
  %v263 = vunpack.c.l.b16 %v224
  %v264 = vunpack.c.l.b16 %v225
  %v265 = vunpack.c.l.b16 %v226
  %v266 = vunpack.c.l.b16 %v227
  %v267 = vunpack.c.l.b16 %v228
  %v268 = vunpack.c.l.b16 %v229
  %v269 = vunpack.c.l.b16 %v230
  %v270 = vunpack.c.l.b16 %v231
  %v271 = vunpack.c.l.b16 %v232
  %v272 = vpack.c.b16 %v257, %v256
  %v273 = vpack.c.b16 %v259, %v258
  %v274 = vpack.c.b16 %v261, %v260
  %v275 = vpack.c.b16 %v263, %v262
  %v276 = vpack.c.b16 %v265, %v264
  %v277 = vpack.c.b16 %v267, %v266
  %v278 = vpack.c.b16 %v269, %v268
  %v279 = vpack.c.b16 %v271, %v270
  %288 = vmatprep.subr.bf16.mxu0 0
  %289 = vmatpush1.bf16.msra.mxu0 %v279
  %290 = vmatprep.subr.bf16.mxu0 0
  %291 = vmatpush1.bf16.msra.mxu0 %v278
  %292 = vmatprep.subr.bf16.mxu0 0
  %293 = vmatpush1.bf16.msra.mxu0 %v277
  %294 = vmatprep.subr.bf16.mxu0 0
  %295 = vmatpush1.bf16.msra.mxu0 %v276
  %296 = vmatprep.subr.bf16.mxu0 0
  %297 = vmatpush1.bf16.msra.mxu0 %v275
  %298 = vmatprep.subr.bf16.mxu0 0
  %299 = vmatpush1.bf16.msra.mxu0 %v274
  %300 = vmatprep.subr.bf16.mxu0 0
  %301 = vmatpush1.bf16.msra.mxu0 %v273
  %302 = vmatprep.subr.bf16.mxu0 0
  %303 = vmatpush1.bf16.msra.mxu0 %v272
  %304 = vmatprep.subr.bf16.mxu0 0
  %305 = vmatpush2.bf16.msra.mxu0 0
  %306 = vmatprep.subr.bf16.mxu0 0
  %307 = vmatpush2.bf16.msra.mxu0 0
  %308 = vmatprep.subr.bf16.mxu0 0
  %309 = vmatpush2.bf16.msra.mxu0 0
  %310 = vmatprep.subr.bf16.mxu0 0
  %311 = vmatpush2.bf16.msra.mxu0 0
  %312 = vmatprep.subr.bf16.mxu0 0
  %313 = vmatpush2.bf16.msra.mxu0 0
  %314 = vmatprep.subr.bf16.mxu0 0
  %315 = vmatpush2.bf16.msra.mxu0 0
  %316 = vmatprep.subr.bf16.mxu0 0
  %317 = vmatpush2.bf16.msra.mxu0 0
  %318 = vmatprep.subr.bf16.mxu0 0
  %319 = vmatpush2.bf16.msra.mxu0 0
  %320 = vmatprep.mubr.bf16.mxu0 0
  %321 = vmatmul.mubr.bf16.gmra.mxu0 %v216
  %v322 = vpop.f32.mrf.mxu0
  %v323 = vadd.f32 %v238, %v322
  %v324 = vpop.f32.mrf.mxu0
  %v325 = vpop.f32.mrf.mxu0
  %v326 = vpop.f32.mrf.mxu0
  %327 = vdwg.mxu0
  %v328 = vmax.f32 %v323, 0.0
  %v329 = vpack.c.bf16 %v328, %v328
  %v330 = vld [vmem:[%s7] sm:$0xf]
  %v331 = vld [vmem:[%s7 + $0x4] sm:$0xf]
  %v332 = vld [vmem:[%s7 + $0x8] sm:$0xf]
  %v333 = vld [vmem:[%s7 + $0xc] sm:$0xf]
  %v334 = vld [vmem:[%s7 + $0x10] sm:$0xf]
  %v335 = vld [vmem:[%s7 + $0x14] sm:$0xf]
  %v336 = vld [vmem:[%s7 + $0x18] sm:$0xf]
  %v337 = vld [vmem:[%s7 + $0x1c] sm:$0xf]
  %v338 = vld [vmem:[%s8] sm:$0x1]
  %v340 = vlaneseq
  %v341 = vshrl.u32 %v340, 7
  %v342 = vsub.s32 0, %v341
  %v343 = vrot.slane %v338, %v342
  %v353 = vunpack.c.l.b16 %v330
  %v354 = vunpack.c.l.b16 %v331
  %v355 = vunpack.c.l.b16 %v332
  %v356 = vunpack.c.l.b16 %v333
  %v357 = vunpack.c.l.b16 %v334
  %v358 = vunpack.c.l.b16 %v335
  %v359 = vunpack.c.l.b16 %v336
  %v360 = vunpack.c.l.b16 %v337
  %v361 = vpack.c.b16 %v354, %v353
  %v362 = vpack.c.b16 %v356, %v355
  %v363 = vpack.c.b16 %v358, %v357
  %v364 = vpack.c.b16 %v360, %v359
  %vm369 = vcmask 523264
  %v371 = vsel %vm369, %v329, 0
  %373 = vmatprep.subr.bf16.mxu0 0
  %374 = vmatpush1.bf16.msra.mxu0 0
  %375 = vmatprep.subr.bf16.mxu0 0
  %376 = vmatpush1.bf16.msra.mxu0 0
  %377 = vmatprep.subr.bf16.mxu0 0
  %378 = vmatpush1.bf16.msra.mxu0 0
  %379 = vmatprep.subr.bf16.mxu0 0
  %380 = vmatpush1.bf16.msra.mxu0 0
  %381 = vmatprep.subr.bf16.mxu0 0
  %382 = vmatpush1.bf16.msra.mxu0 %v364
  %383 = vmatprep.subr.bf16.mxu0 0
  %384 = vmatpush1.bf16.msra.mxu0 %v363
  %385 = vmatprep.subr.bf16.mxu0 0
  %386 = vmatpush1.bf16.msra.mxu0 %v362
  %387 = vmatprep.subr.bf16.mxu0 0
  %388 = vmatpush1.bf16.msra.mxu0 %v361
  %389 = vmatprep.subr.bf16.mxu0 0
  %390 = vmatpush2.bf16.msra.mxu0 0
  %391 = vmatprep.subr.bf16.mxu0 0
  %392 = vmatpush2.bf16.msra.mxu0 0
  %393 = vmatprep.subr.bf16.mxu0 0
  %394 = vmatpush2.bf16.msra.mxu0 0
  %395 = vmatprep.subr.bf16.mxu0 0
  %396 = vmatpush2.bf16.msra.mxu0 0
  %397 = vmatprep.subr.bf16.mxu0 0
  %398 = vmatpush2.bf16.msra.mxu0 0
  %399 = vmatprep.subr.bf16.mxu0 0
  %400 = vmatpush2.bf16.msra.mxu0 0
  %401 = vmatprep.subr.bf16.mxu0 0
  %402 = vmatpush2.bf16.msra.mxu0 0
  %403 = vmatprep.subr.bf16.mxu0 0
  %404 = vmatpush2.bf16.msra.mxu0 0
  %405 = vmatprep.mubr.bf16.mxu0 0
  %406 = vmatmul.mubr.bf16.gmra.mxu0 %v371
  %v407 = vpop.f32.mrf.mxu0
  %v408 = vadd.f32 %v343, %v407
  %v409 = vpop.f32.mrf.mxu0
  %v410 = vpop.f32.mrf.mxu0
  %v411 = vpop.f32.mrf.mxu0
  %412 = vdwg.mxu0
  %vm413 = vcmask 31744
  %414 = vst.msk [vmem:[%s9] sm:$0xff] %vm413, %v408
  // Predicated region
  $region38: #{tpu_custom_call.1} parent=0 // pred_check
    _
  $region39: #{tpu_custom_call.1} parent=0 // pred_check_branch
    %416 = sbr.rel (0) target = $region41
  $region40: #{tpu_custom_call.1} parent=0 // pred_region
    _
  $region41: #{tpu_custom_call.1} parent=0 // pred_fallthru
    _
  // Predicated region
  $region42: #{tpu_custom_call.1} parent=0 // pred_check
    _
  $region43: #{tpu_custom_call.1} parent=0 // pred_check_branch
    %418 = sbr.rel (0) target = $region45
  $region44: #{tpu_custom_call.1} parent=0 // pred_region
    _
  $region45: #{tpu_custom_call.1} parent=0 // pred_fallthru
    _

</llo_original>
